<compile_context>
chip_gen: v7x
topology: tpu7x:2x2x1
jax: 0.10.0
libtpu: 0.0.40
codegen_flags: <defaults>
</compile_context>

<pallas_src>
import jax
import jax.numpy as jnp
from jax.experimental import pallas as pl
from jax.experimental.pallas import tpu as pltpu


_ROW_ALIGN = 32                          # sublane-legal row multiple for f32/bf16/int8
_TARGET_BLOCK_BYTES = 4 * 1024 * 1024    # per-array block; 3 arrays x 2 bufs ~= 24 MiB
_VMEM_LIMIT_BYTES = 48 * 1024 * 1024     # headroom on v5e/v6e (128 MiB) and v7x (64 MiB)


def _add_kernel(res_ref, x_ref, o_ref):
    # Eval path: out = residual + x (no scale operand at all).
    r = res_ref[...].astype(jnp.float32)
    x = x_ref[...].astype(jnp.float32)
    o_ref[...] = (r + x).astype(o_ref.dtype)


def _addcmul_kernel(scale_ref, res_ref, x_ref, o_ref):
    # Training path: out = residual + scale * x ; scale is a (1,) f32 scalar in SMEM.
    s = scale_ref[0]
    r = res_ref[...].astype(jnp.float32)
    x = x_ref[...].astype(jnp.float32)
    o_ref[...] = (r + s * x).astype(o_ref.dtype)


def _as_2d(arr):
    """Metadata-only reshape to a lane-friendly 2-D slab (never copies in HBM)."""
    n = arr.size
    # Fast path: widest lane-dense layout that evenly divides the flat length.
    for lanes in (4096, 2048, 1024, 512, 256, 128):
        if n % lanes == 0:
            return arr.reshape(n // lanes, lanes)
    # Ragged fallback: collapse leading dims, keep the native last dim.  Blocks use
    # full-extent dims (always legal) and Pallas masks any ragged row block, so
    # there is NO wrapper-side padding and no extra HBM passes.
    if arr.ndim >= 2:
        return arr.reshape(-1, arr.shape[-1])
    return arr.reshape(1, n)


def _pick_tile_rows(rows, lanes, itemsize):
    """Row-block size: ~_TARGET_BLOCK_BYTES per array; prefer >=2 grid steps."""
    cap = max(1, _TARGET_BLOCK_BYTES // (lanes * itemsize))
    if rows <= cap:
        # Whole row extent fits in one block.  Prefer >=2 grid steps so a
        # multi-TensorCore chip (v7x) can shard the mem-bound grid across cores.
        if rows >= 2 * _ROW_ALIGN:
            half = (rows + 1) // 2
            return ((half + _ROW_ALIGN - 1) // _ROW_ALIGN) * _ROW_ALIGN
        return rows                      # full-extent rows (always legal)
    return max(_ROW_ALIGN, (cap // _ROW_ALIGN) * _ROW_ALIGN)


def _fused_residual(residual, x, scale=None):
    """out = residual + x            (scale is None, eval)
       out = residual + scale * x    (scale is a traced f32 scalar, training)"""
    assert residual.shape == x.shape, "residual and x must have the same shape"
    shape = residual.shape
    out_dtype = jnp.promote_types(residual.dtype, x.dtype)

    res2d = _as_2d(residual)
    x2d = _as_2d(x)
    rows, lanes = res2d.shape
    itemsize = max(jnp.dtype(residual.dtype).itemsize,
                   jnp.dtype(x.dtype).itemsize,
                   jnp.dtype(out_dtype).itemsize)
    tile_rows = _pick_tile_rows(rows, lanes, itemsize)
    grid = (pl.cdiv(rows, tile_rows),)   # ragged last block is masked by Pallas

    def tile_spec():
        return pl.BlockSpec((tile_rows, lanes), lambda i: (i, 0))

    compiler_params = pltpu.CompilerParams(
        dimension_semantics=("parallel",),       # shard grid steps across TCs (v7x)
        vmem_limit_bytes=_VMEM_LIMIT_BYTES,
    )
    out_shape = jax.ShapeDtypeStruct((rows, lanes), out_dtype)

    if scale is None:
        out2d = pl.pallas_call(
            _add_kernel,
            out_shape=out_shape,
            grid_spec=pltpu.PrefetchScalarGridSpec(
                num_scalar_prefetch=0,
                grid=grid,
                in_specs=[tile_spec(), tile_spec()],
                out_specs=tile_spec(),
            ),
            compiler_params=compiler_params,
        )(res2d, x2d)
    else:
        scale1 = jnp.reshape(scale, (1,)).astype(jnp.float32)
        out2d = pl.pallas_call(
            _addcmul_kernel,
            out_shape=out_shape,
            grid_spec=pltpu.PrefetchScalarGridSpec(
                num_scalar_prefetch=0,
                grid=grid,
                in_specs=[
                    pl.BlockSpec(memory_space=pltpu.MemorySpace.SMEM),  # scalar scale
                    tile_spec(),
                    tile_spec(),
                ],
                out_specs=tile_spec(),
            ),
            compiler_params=compiler_params,
        )(scale1, res2d, x2d)

    return out2d.reshape(shape)


def stochastic_depth_residual(residual, x, *, survival_prob, training=False, rng_key=None):
    """Forward pass of StochasticDepthResidual (see module docstring above)."""
    if not training:
        return _fused_residual(residual, x)          # eval: residual + x
    if rng_key is None:
        raise ValueError("rng_key is required in training mode")
    # Single scalar Bernoulli mask, exactly like F.dropout on a 0-d ones() buffer.
    keep = jax.random.bernoulli(rng_key, p=survival_prob)
    scale = jnp.where(keep, jnp.float32(1.0 / survival_prob), jnp.float32(0.0))
    return _fused_residual(residual, x, scale)


if __name__ == "__main__":
    key = jax.random.PRNGKey(0)
    k1, k2, k3, k4, k5 = jax.random.split(key, 5)

    # NCHW activation-like shapes, consistent with the ConvNet module.
    shape = (2, 4, 16, 16)
    residual = jax.random.normal(k1, shape, dtype=jnp.float32)
    x = jax.random.normal(k2, shape, dtype=jnp.float32)
    survival_prob = 0.8

    # --- eval mode: residual + x ---
    y_eval = stochastic_depth_residual(
        residual, x, survival_prob=survival_prob, training=False)
    jax.block_until_ready(y_eval)
    ref_eval = residual + x
    assert y_eval.shape == shape and y_eval.dtype == residual.dtype
    assert jnp.allclose(y_eval, ref_eval, atol=1e-6, rtol=1e-6)

    # --- training mode: residual + mask * x, mask in {0, 1/survival_prob} ---
    y_train = stochastic_depth_residual(
        residual, x, survival_prob=survival_prob, training=True, rng_key=k3)
    jax.block_until_ready(y_train)
    keep = jax.random.bernoulli(k3, p=survival_prob)
    scale_ref = jnp.where(keep, jnp.float32(1.0 / survival_prob), jnp.float32(0.0))
    ref_train = residual + scale_ref * x
    assert y_train.shape == shape and y_train.dtype == residual.dtype
    assert jnp.allclose(y_train, ref_train, atol=1e-5, rtol=1e-5)

    # --- ragged shape (size not a multiple of 128): exercises the no-pad fallback ---
    shape_r = (2, 3, 5, 7)
    res_r = jax.random.normal(k4, shape_r, dtype=jnp.float32)
    x_r = jax.random.normal(k5, shape_r, dtype=jnp.float32)
    y_r = stochastic_depth_residual(
        res_r, x_r, survival_prob=survival_prob, training=True, rng_key=k3)
    jax.block_until_ready(y_r)
    ref_r = res_r + scale_ref * x_r
    assert y_r.shape == shape_r
    assert jnp.allclose(y_r, ref_r, atol=1e-5, rtol=1e-5)

    print("KERNEL_OK")
</pallas_src>

<mosaic_0001>
module attributes {stable_mosaic.version = 11 : i64} {
  func.func @_add_kernel(%arg0: i32, %arg1: memref<1x2048xf32, #tpu.memory_space<vmem>>, %arg2: memref<1x2048xf32, #tpu.memory_space<vmem>>, %arg3: memref<1x2048xf32, #tpu.memory_space<vmem>>) attributes {dimension_semantics = [#tpu.dimension_semantics<parallel>], iteration_bounds = array<i64: 1>, scalar_prefetch = 0 : i64, scratch_operands = 0 : i64, tpu.core_type = #tpu.core_type<tc>, window_params = [{transform_indices = @transform_0, window_bounds = array<i64: 1, 2048>}, {transform_indices = @transform_1, window_bounds = array<i64: 1, 2048>}, {transform_indices = @transform_2, window_bounds = array<i64: 1, 2048>}]} {
    %c0 = arith.constant 0 : index
    %c0_0 = arith.constant 0 : index
    %0 = vector.load %arg1[%c0, %c0_0] : memref<1x2048xf32, #tpu.memory_space<vmem>>, vector<1x2048xf32>
    %c0_1 = arith.constant 0 : index
    %c0_2 = arith.constant 0 : index
    %1 = vector.load %arg2[%c0_1, %c0_2] : memref<1x2048xf32, #tpu.memory_space<vmem>>, vector<1x2048xf32>
    %2 = arith.addf %0, %1 : vector<1x2048xf32>
    %c0_3 = arith.constant 0 : index
    %c0_4 = arith.constant 0 : index
    %3 = vector.load %arg3[%c0_3, %c0_4] : memref<1x2048xf32, #tpu.memory_space<vmem>>, vector<1x2048xf32>
    tpu.vector_store %arg3[%c0_3, %c0_4], %2 {strides = array<i32>} : memref<1x2048xf32, #tpu.memory_space<vmem>>, vector<1x2048xf32>,
    return
  }
  func.func @transform_0(%arg0: i32) -> (i32, i32) {
    %c0_i32 = arith.constant 0 : i32
    %c0_i32_0 = arith.constant 0 : i32
    return %arg0, %c0_i32 : i32, i32
  }
  func.func @transform_1(%arg0: i32) -> (i32, i32) {
    %c0_i32 = arith.constant 0 : i32
    %c0_i32_0 = arith.constant 0 : i32
    return %arg0, %c0_i32 : i32, i32
  }
  func.func @transform_2(%arg0: i32) -> (i32, i32) {
    %c0_i32 = arith.constant 0 : i32
    %c0_i32_0 = arith.constant 0 : i32
    return %arg0, %c0_i32 : i32, i32
  }
}

</mosaic_0001>

<llo_original>
// kernel: tpu_custom_call.1
$region0: #{tpu_custom_call.1}
  #allocation0 [shape = 'u32[]', space=smem, size = 0x4, offset = 0x4, fixed_abs, tag = 'smem constant byte address 0x4 - core index']
  #allocation1 [shape = 'u32[144,128]{1,0:T(1,128)}', space=vmem, size = 0x12000, scoped, tag = 'internal scratch']
  %s0 = inlined_call_operand.hbm [shape: f32[1,2048], index: 0, kind: input, shape index: {}]
  %s1 = inlined_call_operand.hbm [shape: f32[1,2048], index: 1, kind: input, shape index: {}]
  %s2 = inlined_call_operand.hbm [shape: f32[1,2048], index: 2, kind: output, shape index: {}]
  %s3 = sld [smem:[#allocation0]]
  $region26: #{tpu_custom_call.1} parent=0
    _
  %s5 = ssub.s32 1, %s3
  %s6 = scalar_select 0, %s5, %s3
  $region1: #{tpu_custom_call.1} parent=0
    #allocation2 [shape = 'u8[8192]{0}', space=vmem, size = 0x2000, scoped, tag = 'input window, operand 0, single buffered']
    #allocation3 [shape = 's32[1]{0}', space=sflag, size = 0x4, scoped, tag = 'scoped memory for tpu_custom_call.1']
    #allocation4 [shape = 's32[1]{0}', space=sflag, size = 0x4, scoped, tag = 'scoped memory for tpu_custom_call.1']
    #allocation5 [shape = 'u8[8192]{0}', space=vmem, size = 0x2000, scoped, tag = 'input window, operand 1, single buffered']
    #allocation6 [shape = 's32[1]{0}', space=sflag, size = 0x4, scoped, tag = 'scoped memory for tpu_custom_call.1']
    #allocation7 [shape = 'u8[8192]{0}', space=vmem, size = 0x2000, scoped, tag = 'output window, operand 0, single buffered']
    %7 = vsyncpa [#allocation3], 0
    %8 = vsyncpa [#allocation6], 0
    %9 = vsyncpa [#allocation4], 0
    // Predicated region
    $region2: #{tpu_custom_call.1} parent=1 // pred_check
      _
    $region3: #{tpu_custom_call.1} parent=1 // pred_check_branch
      %11 = sbr.rel (0) target = $region5
    $region4: #{tpu_custom_call.1} parent=1 // pred_region
      %s13 = ssub.s32 256, 256
      %14 = vsyncadd [#allocation3], %s13
      %s16 = sshll.u32 [#allocation2], 4
      %s17 = int_to_ptr.vmem [resolvable:$true] %s16
      %19 = dma.hbm_to_vmem [thread:$0]  %s0, 256, %s17, [#allocation3]
    $region5: #{tpu_custom_call.1} parent=1 // pred_fallthru
      _
    // Predicated region
    $region6: #{tpu_custom_call.1} parent=1 // pred_check
      _
    $region7: #{tpu_custom_call.1} parent=1 // pred_check_branch
      %21 = sbr.rel (0) target = $region9
    $region8: #{tpu_custom_call.1} parent=1 // pred_region
      %s23 = ssub.s32 256, 256
      %24 = vsyncadd [#allocation6], %s23
      %s26 = sshll.u32 [#allocation5], 4
      %s27 = int_to_ptr.vmem [resolvable:$true] %s26
      %29 = dma.hbm_to_vmem [thread:$0]  %s1, 256, %s27, [#allocation6]
    $region9: #{tpu_custom_call.1} parent=1 // pred_fallthru
      _
    // Predicated region
    $region10: #{tpu_custom_call.1} parent=1 // pred_check
      _
    $region11: #{tpu_custom_call.1} parent=1 // pred_check_branch
      %31 = sbr.rel (0) target = $region13
    $region12: #{tpu_custom_call.1} parent=1 // pred_region
      %32 = dma.done [#allocation3], 256
    $region13: #{tpu_custom_call.1} parent=1 // pred_fallthru
      _
    // Predicated region
    $region14: #{tpu_custom_call.1} parent=1 // pred_check
      _
    $region15: #{tpu_custom_call.1} parent=1 // pred_check_branch
      %34 = sbr.rel (0) target = $region17
    $region16: #{tpu_custom_call.1} parent=1 // pred_region
      %35 = dma.done [#allocation6], 256
    $region17: #{tpu_custom_call.1} parent=1 // pred_fallthru
      _
    %v36 = vld [vmem:[#allocation2] sm:$0xff]
    %v37 = vld [vmem:[#allocation2 + $0x8] sm:$0xff]
    %v38 = vld [vmem:[#allocation5] sm:$0xff]
    %v39 = vld [vmem:[#allocation5 + $0x8] sm:$0xff]
    %v40 = vadd.f32 %v36, %v38
    %v41 = vadd.f32 %v37, %v39
    %42 = vst [vmem:[#allocation7] sm:$0xff] %v40
    %43 = vst [vmem:[#allocation7 + $0x8] sm:$0xff] %v41
    // Predicated region
    $region18: #{tpu_custom_call.1} parent=1 // pred_check
      _
    $region19: #{tpu_custom_call.1} parent=1 // pred_check_branch
      %45 = sbr.rel (0) target = $region21
    $region20: #{tpu_custom_call.1} parent=1 // pred_region
      %s47 = ssub.s32 256, 256
      %48 = vsyncadd [#allocation4], %s47
      %s50 = sshll.u32 [#allocation7], 4
      %s51 = int_to_ptr.vmem [resolvable:$true] %s50
      %53 = dma.vmem_to_hbm [thread:$0]  %s51, 256, %s2, [#allocation4]
    $region21: #{tpu_custom_call.1} parent=1 // pred_fallthru
      _
    // Predicated region
    $region22: #{tpu_custom_call.1} parent=1 // pred_check
      _
    $region23: #{tpu_custom_call.1} parent=1 // pred_check_branch
      %55 = sbr.rel (0) target = $region25
    $region24: #{tpu_custom_call.1} parent=1 // pred_region
      %56 = dma.done [#allocation4], 256
    $region25: #{tpu_custom_call.1} parent=1 // pred_fallthru
      _
    %57 = vsyncpa [#allocation3], 1
    %58 = vsyncpa [#allocation6], 1
    %59 = vsyncpa [#allocation4], 1

</llo_original>
